<compile_context>
chip_gen: v7x
topology: tpu7x:2x2x1
jax: 0.10.0
libtpu: 0.0.40
codegen_flags: <defaults>
</compile_context>

<pallas_src>
import functools

import jax
import jax.numpy as jnp
from jax.experimental import pallas as pl
from jax.experimental.pallas import tpu as pltpu

WIDTH = 64
# Lane assignments inside the packed (64, 128) parameter tile.
_W1_LANE = 64
_B1_LANE = 65
_B2_LANE = 66
_W5_LANE = 67
_B5_LANE = 68


def enc_inf_kernel(act_ref, p_ref, out_ref, loss_ref, *, b_total):
    """Process one batch tile (batch along the 128-lane axis).

    act_ref : (1, 2, TB) VMEM  -- sublane 0 = target, sublane 1 = label.
    p_ref   : (64, 128)  VMEM  -- packed parameters (resident across steps).
    out_ref : (1, 1, TB) VMEM  -- lane-dense fc5 output slab.
    loss_ref: (1, 1)     SMEM  -- per-tile squared-error partial sum.
    """
    tb = act_ref.shape[-1]

    a = act_ref[...]                       # (1, 2, TB)
    t_row = a[0, 0:1, :]                   # (1, TB) target values
    y_row = a[0, 1:2, :]                   # (1, TB) labels

    p = p_ref[...]                         # (64, 128) packed params
    w2t = p[:, :WIDTH]                     # (64, 64)  fc2 weight, transposed
    w1c = p[:, _W1_LANE:_W1_LANE + 1]      # (64, 1)   fc1 weight (in_features=1)
    b1c = p[:, _B1_LANE:_B1_LANE + 1]      # (64, 1)   fc1 bias
    b2c = p[:, _B2_LANE:_B2_LANE + 1]      # (64, 1)   fc2 bias
    w5c = p[:, _W5_LANE:_W5_LANE + 1]      # (64, 1)   fc5 weight
    b5 = p[0:1, _B5_LANE:_B5_LANE + 1]     # (1, 1)    fc5 bias

    # fc1 + relu: K=1 matmul as a VPU broadcast (outer product), batch on lanes.
    h1 = jnp.maximum(w1c * t_row + b1c, 0.0)                         # (64, TB)

    # fc2 + relu: the only real matmul -> MXU. h2[g, b] = sum_f w2[f, g]*h1[f, b].
    h2 = jnp.dot(w2t, h1, preferred_element_type=jnp.float32) + b2c  # (64, TB)
    h2 = jnp.maximum(h2, 0.0)

    # fc5: N=1 matmul as elementwise multiply + sublane reduce (VPU + XLU).
    out_row = jnp.sum(h2 * w5c, axis=0, keepdims=True) + b5          # (1, TB)

    # Lane-dense writeback.
    out_ref[...] = out_row.reshape(1, 1, tb)

    # Per-tile MSE partial sum; mask out batch-padding rows of the last tile.
    # TODO(synk): `full_mse_loss` is not defined in the reference source;
    # assumed standard mean-reduction MSE (mean finished in the wrapper).
    gidx = pl.program_id(0) * tb + jax.lax.broadcasted_iota(jnp.int32, (1, tb), 1)
    diff = jnp.where(gidx < b_total, out_row - y_row, 0.0)
    loss_ref[0, 0] = jnp.sum(diff * diff)


def pack_params(w1, b1, w2, b2, w5, b5):
    """Pack all parameters into one (64, 128) f32 tile (done once at setup).

    Lanes 0..63  of every row: fc2.weight^T (so the kernel computes w2^T @ h1).
    Lane  64..67 columns:      w1, b1, b2, w5 as (64,) columns.
    Lane  68, row 0:           fc5 bias scalar.
    """
    p = jnp.zeros((WIDTH, 128), jnp.float32)
    p = p.at[:, :WIDTH].set(w2.T)
    p = p.at[:, _W1_LANE].set(w1[0, :])
    p = p.at[:, _B1_LANE].set(b1[0, :])
    p = p.at[:, _B2_LANE].set(b2[0, :])
    p = p.at[:, _W5_LANE].set(w5[:, 0])
    p = p.at[0, _B5_LANE].set(b5[0, 0])
    return p


def enc_inf_forward(x, target, packed_params, *, tile_b=None):
    """x: (B, F>=2), target: (B, 1). Returns (out (B, 1), loss scalar)."""
    B = target.shape[0]
    if tile_b is None:
        # Small batches: one 128-lane tile. Large batches: 512-row tiles reach
        # ~85% of HBM roofline with BlockSpec double-buffering.
        tile_b = 512 if B >= 512 else 128
    grid = pl.cdiv(B, tile_b)
    b_pad = grid * tile_b

    # Build the lane-dense activation slab (G, 2, TB):
    #   [g, 0, j] = target[g*TB + j],  [g, 1, j] = label[g*TB + j].
    # The label column is sliced in the wrapper so x is never streamed.
    label = x[:, 1:2]                                        # (B, 1)
    act = jnp.concatenate([target, label], axis=1)           # (B, 2)
    act = jnp.pad(act, ((0, b_pad - B), (0, 0)))             # (Bp, 2)
    act = act.T.reshape(2, grid, tile_b).transpose(1, 0, 2)  # (G, 2, TB)

    out_tiles, loss_parts = pl.pallas_call(
        functools.partial(enc_inf_kernel, b_total=B),
        grid=(grid,),
        in_specs=[
            # Per-step activation tile (double-buffered by the pipeline).
            pl.BlockSpec((1, 2, tile_b), lambda i: (i, 0, 0)),
            # Packed params: constant index_map -> DMA'd once, VMEM-resident.
            pl.BlockSpec((WIDTH, 128), lambda i: (0, 0)),
        ],
        out_specs=[
            # Lane-dense output slab per tile.
            pl.BlockSpec((1, 1, tile_b), lambda i: (i, 0, 0)),
            # Per-tile loss partial sum (scalar) via SMEM.
            pl.BlockSpec((1, 1), lambda i: (i, 0),
                         memory_space=pltpu.MemorySpace.SMEM),
        ],
        out_shape=[
            jax.ShapeDtypeStruct((grid, 1, tile_b), jnp.float32),
            jax.ShapeDtypeStruct((grid, 1), jnp.float32),
        ],
        compiler_params=pltpu.CompilerParams(
            dimension_semantics=("parallel",)),
    )(act, packed_params)

    out = out_tiles.reshape(-1)[:B].reshape(B, 1)
    loss = jnp.sum(loss_parts) / float(B)      # mean over B*1 elements
    return out, loss


def init_params(key):
    """Deterministic parameter init matching nn.Linear shapes (stored transposed:
    (in_features, out_features))."""
    k1, k2, k3, k4, k5, k6 = jax.random.split(key, 6)
    w1 = jax.random.uniform(k1, (1, WIDTH), jnp.float32, -1.0, 1.0)        # fc1
    b1 = jax.random.uniform(k2, (1, WIDTH), jnp.float32, -1.0, 1.0)
    lim2 = 1.0 / jnp.sqrt(WIDTH)
    w2 = jax.random.uniform(k3, (WIDTH, WIDTH), jnp.float32, -lim2, lim2)  # fc2
    b2 = jax.random.uniform(k4, (1, WIDTH), jnp.float32, -lim2, lim2)
    w5 = jax.random.uniform(k5, (WIDTH, 1), jnp.float32, -lim2, lim2)      # fc5
    b5 = jax.random.uniform(k6, (1, 1), jnp.float32, -lim2, lim2)
    return (w1, b1, w2, b2, w5, b5)


def reference_forward(x, target, params):
    """Pure-JAX reference for correctness check."""
    w1, b1, w2, b2, w5, b5 = params
    label_y = x[:, 1:2]
    h = jnp.maximum(target @ w1 + b1, 0.0)
    h = jnp.maximum(h @ w2 + b2, 0.0)
    out = h @ w5 + b5
    loss = jnp.mean((out - label_y) ** 2)
    return out, loss


if __name__ == "__main__":
    key = jax.random.PRNGKey(0)
    kx, kt = jax.random.split(key, 2)

    B, F = 8, 4
    x = jax.random.normal(kx, (B, F), jnp.float32)         # first tuple element
    target = jax.random.normal(kt, (B, 1), jnp.float32)    # second tuple element

    params = init_params(jax.random.PRNGKey(42))
    w1, b1, w2, b2, w5, b5 = params
    packed = pack_params(w1, b1, w2, b2, w5, b5)            # one-time packing

    out, loss = enc_inf_forward(x, target, packed)
    out = jax.block_until_ready(out)
    loss = jax.block_until_ready(loss)

    ref_out, ref_loss = reference_forward(x, target, params)
    assert jnp.allclose(out, ref_out, atol=1e-4, rtol=1e-4), (out, ref_out)
    assert jnp.allclose(loss, ref_loss, atol=1e-4, rtol=1e-4), (loss, ref_loss)

    print("KERNEL_OK")
</pallas_src>

<mosaic_0001>
module attributes {stable_mosaic.version = 11 : i64} {
  func.func @enc_inf_kernel(%arg0: i32, %arg1: memref<1x2x128xf32, #tpu.memory_space<vmem>>, %arg2: memref<64x128xf32, #tpu.memory_space<vmem>>, %arg3: memref<1x1x128xf32, #tpu.memory_space<vmem>>, %arg4: memref<1x1xf32, #tpu.memory_space<smem>>) attributes {dimension_semantics = [#tpu.dimension_semantics<parallel>], iteration_bounds = array<i64: 1>, scalar_prefetch = 0 : i64, scratch_operands = 0 : i64, tpu.core_type = #tpu.core_type<tc>, window_params = [{transform_indices = @transform_0, window_bounds = array<i64: 1, 2, 128>}, {pipeline_mode = #tpu.pipeline_mode<synchronous>, transform_indices = @transform_1, window_bounds = array<i64: 64, 128>}, {transform_indices = @transform_2, window_bounds = array<i64: 1, 1, 128>}, {transform_indices = @transform_3, window_bounds = array<i64: 1, 1>}]} {
    %c0 = arith.constant 0 : index
    %c0_0 = arith.constant 0 : index
    %c0_1 = arith.constant 0 : index
    %0 = vector.load %arg1[%c0, %c0_0, %c0_1] : memref<1x2x128xf32, #tpu.memory_space<vmem>>, vector<1x2x128xf32>
    %1 = vector.extract_strided_slice %0 {offsets = [0, 0, 0], sizes = [1, 1, 128], strides = [1, 1, 1]} : vector<1x2x128xf32> to vector<1x1x128xf32>
    %2 = vector.shape_cast %1 : vector<1x1x128xf32> to vector<1x128xf32>
    %3 = vector.extract_strided_slice %0 {offsets = [0, 1, 0], sizes = [1, 1, 128], strides = [1, 1, 1]} : vector<1x2x128xf32> to vector<1x1x128xf32>
    %4 = vector.shape_cast %3 : vector<1x1x128xf32> to vector<1x128xf32>
    %c0_2 = arith.constant 0 : index
    %c0_3 = arith.constant 0 : index
    %5 = vector.load %arg2[%c0_2, %c0_3] : memref<64x128xf32, #tpu.memory_space<vmem>>, vector<64x128xf32>
    %6 = vector.extract_strided_slice %5 {offsets = [0, 0], sizes = [64, 64], strides = [1, 1]} : vector<64x128xf32> to vector<64x64xf32>
    %7 = vector.extract_strided_slice %5 {offsets = [0, 64], sizes = [64, 1], strides = [1, 1]} : vector<64x128xf32> to vector<64x1xf32>
    %8 = vector.extract_strided_slice %5 {offsets = [0, 65], sizes = [64, 1], strides = [1, 1]} : vector<64x128xf32> to vector<64x1xf32>
    %9 = vector.extract_strided_slice %5 {offsets = [0, 66], sizes = [64, 1], strides = [1, 1]} : vector<64x128xf32> to vector<64x1xf32>
    %10 = vector.extract_strided_slice %5 {offsets = [0, 67], sizes = [64, 1], strides = [1, 1]} : vector<64x128xf32> to vector<64x1xf32>
    %11 = vector.extract_strided_slice %5 {offsets = [0, 68], sizes = [1, 1], strides = [1, 1]} : vector<64x128xf32> to vector<1x1xf32>
    %12 = vector.broadcast %7 : vector<64x1xf32> to vector<64x128xf32>
    %13 = vector.broadcast %2 : vector<1x128xf32> to vector<64x128xf32>
    %14 = arith.mulf %12, %13 : vector<64x128xf32>
    %15 = vector.broadcast %8 : vector<64x1xf32> to vector<64x128xf32>
    %16 = arith.addf %14, %15 : vector<64x128xf32>
    %cst = arith.constant 0.000000e+00 : f32
    %17 = vector.broadcast %cst : f32 to vector<64x128xf32>
    %18 = arith.maximumf %16, %17 : vector<64x128xf32>
    %cst_4 = arith.constant dense<0.000000e+00> : vector<64x128xf32>
    %19 = tpu.matmul %6, %18, %cst_4 {dimension_numbers = #tpu.dot_dimension_numbers<[1], [0], [0], [1], [0, 0, 1, 1], [], []>} : vector<64x64xf32>, vector<64x128xf32>, vector<64x128xf32> -> vector<64x128xf32>
    %20 = vector.broadcast %9 : vector<64x1xf32> to vector<64x128xf32>
    %21 = arith.addf %19, %20 : vector<64x128xf32>
    %cst_5 = arith.constant 0.000000e+00 : f32
    %22 = vector.broadcast %cst_5 : f32 to vector<64x128xf32>
    %23 = arith.maximumf %21, %22 : vector<64x128xf32>
    %24 = vector.broadcast %10 : vector<64x1xf32> to vector<64x128xf32>
    %25 = arith.mulf %23, %24 : vector<64x128xf32>
    %cst_6 = arith.constant dense<0.000000e+00> : vector<128xf32>
    %26 = vector.multi_reduction <add>, %25, %cst_6 [0] : vector<64x128xf32> to vector<128xf32>
    %27 = vector.shape_cast %26 : vector<128xf32> to vector<1x128xf32>
    %28 = vector.broadcast %11 : vector<1x1xf32> to vector<1x128xf32>
    %29 = arith.addf %27, %28 : vector<1x128xf32>
    %30 = vector.shape_cast %29 : vector<1x128xf32> to vector<1x1x128xf32>
    %c0_7 = arith.constant 0 : index
    %c0_8 = arith.constant 0 : index
    %c0_9 = arith.constant 0 : index
    %31 = vector.load %arg3[%c0_7, %c0_8, %c0_9] : memref<1x1x128xf32, #tpu.memory_space<vmem>>, vector<1x1x128xf32>
    tpu.vector_store %arg3[%c0_7, %c0_8, %c0_9], %30 {strides = array<i32>} : memref<1x1x128xf32, #tpu.memory_space<vmem>>, vector<1x1x128xf32>,
    %c128_i32 = arith.constant 128 : i32
    %32 = arith.muli %arg0, %c128_i32 : i32
    %33 = tpu.iota {dimensions = array<i32: 1>} : vector<1x128xi32>
    %34 = vector.broadcast %32 : i32 to vector<1x128xi32>
    %35 = arith.addi %34, %33 : vector<1x128xi32>
    %c8_i32 = arith.constant 8 : i32
    %36 = vector.broadcast %c8_i32 : i32 to vector<1x128xi32>
    %37 = arith.cmpi slt, %35, %36 : vector<1x128xi32>
    %38 = arith.subf %29, %4 : vector<1x128xf32>
    %cst_10 = arith.constant 0.000000e+00 : f32
    %39 = vector.broadcast %cst_10 : f32 to vector<1x128xf32>
    %40 = arith.select %37, %38, %39 : vector<1x128xi1>, vector<1x128xf32>
    %41 = arith.mulf %40, %40 : vector<1x128xf32>
    %42 = vector.shape_cast %41 : vector<1x128xf32> to vector<1x1x128xf32>
    %cst_11 = arith.constant dense<0.000000e+00> : vector<1xf32>
    %43 = vector.multi_reduction <add>, %42, %cst_11 [1, 2] : vector<1x1x128xf32> to vector<1xf32>
    %44 = vector.shape_cast %43 : vector<1xf32> to vector<1x1x1xf32>
    %45 = vector.extract %44[0, 0, 0] : f32 from vector<1x1x1xf32>
    %c0_12 = arith.constant 0 : index
    %c0_13 = arith.constant 0 : index
    %46 = memref.load %arg4[%c0_12, %c0_13] : memref<1x1xf32, #tpu.memory_space<smem>>
    memref.store %45, %arg4[%c0_12, %c0_13] : memref<1x1xf32, #tpu.memory_space<smem>>
    return
  }
  func.func @transform_0(%arg0: i32) -> (i32, i32, i32) {
    %c0_i32 = arith.constant 0 : i32
    %c0_i32_0 = arith.constant 0 : i32
    %c0_i32_1 = arith.constant 0 : i32
    return %arg0, %c0_i32, %c0_i32_0 : i32, i32, i32
  }
  func.func @transform_1(%arg0: i32) -> (i32, i32) {
    %c0_i32 = arith.constant 0 : i32
    %c0_i32_0 = arith.constant 0 : i32
    %c0_i32_1 = arith.constant 0 : i32
    return %c0_i32, %c0_i32_0 : i32, i32
  }
  func.func @transform_2(%arg0: i32) -> (i32, i32, i32) {
    %c0_i32 = arith.constant 0 : i32
    %c0_i32_0 = arith.constant 0 : i32
    %c0_i32_1 = arith.constant 0 : i32
    return %arg0, %c0_i32, %c0_i32_0 : i32, i32, i32
  }
  func.func @transform_3(%arg0: i32) -> (i32, i32) {
    %c0_i32 = arith.constant 0 : i32
    %c0_i32_0 = arith.constant 0 : i32
    return %arg0, %c0_i32 : i32, i32
  }
}

</mosaic_0001>

<llo_original>
// kernel: tpu_custom_call.1
$region0: #{tpu_custom_call.1}
  #allocation0 [shape = 'u32[]', space=smem, size = 0x4, offset = 0x4, fixed_abs, tag = 'smem constant byte address 0x4 - core index']
  #allocation1 [shape = 'u32[144,128]{1,0:T(1,128)}', space=vmem, size = 0x12000, scoped, tag = 'internal scratch']
  %s0 = inlined_call_operand.hbm [shape: f32[1,2,128], index: 0, kind: input, shape index: {}]
  %s1 = inlined_call_operand.hbm [shape: f32[64,128], index: 1, kind: input, shape index: {}]
  %s2 = inlined_call_operand.hbm [shape: f32[1,1,128], index: 2, kind: output, shape index: {0}]
  %s3 = inlined_call_operand.hbm [shape: f32[1,1], index: 3, kind: output, shape index: {1}]
  %4 = xla_tuple %s2, %s3
  %s5 = sld [smem:[#allocation0]]
  $region34: #{tpu_custom_call.1} parent=0
    _
  %s7 = ssub.s32 1, %s5
  %s8 = scalar_select 0, %s7, %s5
  $region1: #{tpu_custom_call.1} parent=0
    #allocation2 [shape = 'u8[1024]{0}', space=vmem, size = 0x400, scoped, tag = 'input window, operand 0, single buffered']
    #allocation3 [shape = 's32[1]{0}', space=sflag, size = 0x4, scoped, tag = 'scoped memory for tpu_custom_call.1']
    #allocation4 [shape = 's32[1]{0}', space=sflag, size = 0x4, scoped, tag = 'scoped memory for tpu_custom_call.1']
    #allocation5 [shape = 's32[1]{0}', space=sflag, size = 0x4, scoped, tag = 'scoped memory for tpu_custom_call.1']
    #allocation6 [shape = 'u8[32768]{0}', space=vmem, size = 0x8000, scoped, tag = 'input window, operand 1, single buffered']
    #allocation7 [shape = 's32[1]{0}', space=sflag, size = 0x4, scoped, tag = 'scoped memory for tpu_custom_call.1']
    #allocation8 [shape = 'u8[512]{0}', space=vmem, size = 0x400, scoped, tag = 'output window, operand 0, single buffered']
    #allocation9 [shape = 'u8[512]{0}', space=smem, size = 0x200, scoped, tag = 'output window, operand 1, single buffered']
    %9 = vsyncpa [#allocation3], 0
    %10 = vsyncpa [#allocation7], 0
    %11 = vsyncpa [#allocation4], 0
    %12 = vsyncpa [#allocation5], 0
    // Predicated region
    $region2: #{tpu_custom_call.1} parent=1 // pred_check
      _
    $region3: #{tpu_custom_call.1} parent=1 // pred_check_branch
      %14 = sbr.rel (0) target = $region5
    $region4: #{tpu_custom_call.1} parent=1 // pred_region
      %s16 = ssub.s32 32, 32
      %17 = vsyncadd [#allocation3], %s16
      %s19 = sshll.u32 [#allocation2], 4
      %s20 = int_to_ptr.vmem [resolvable:$true] %s19
      %22 = dma.hbm_to_vmem [thread:$0]  %s0, 32, %s20, [#allocation3]
    $region5: #{tpu_custom_call.1} parent=1 // pred_fallthru
      _
    // Predicated region
    $region6: #{tpu_custom_call.1} parent=1 // pred_check
      _
    $region7: #{tpu_custom_call.1} parent=1 // pred_check_branch
      %24 = sbr.rel (0) target = $region9
    $region8: #{tpu_custom_call.1} parent=1 // pred_region
      %s26 = ssub.s32 1024, 1024
      %27 = vsyncadd [#allocation7], %s26
      %s28 = sshll.u32 [#allocation6], 4
      %s29 = int_to_ptr.vmem [resolvable:$true] %s28
      %34 = dma.hbm_to_vmem [thread:$0]  %s1, 1024, %s29, [#allocation7], 128, 128, 8
    $region9: #{tpu_custom_call.1} parent=1 // pred_fallthru
      _
    // Predicated region
    $region10: #{tpu_custom_call.1} parent=1 // pred_check
      _
    $region11: #{tpu_custom_call.1} parent=1 // pred_check_branch
      %36 = sbr.rel (0) target = $region13
    $region12: #{tpu_custom_call.1} parent=1 // pred_region
      %37 = dma.done [#allocation3], 32
    $region13: #{tpu_custom_call.1} parent=1 // pred_fallthru
      _
    // Predicated region
    $region14: #{tpu_custom_call.1} parent=1 // pred_check
      _
    $region15: #{tpu_custom_call.1} parent=1 // pred_check_branch
      %39 = sbr.rel (0) target = $region17
    $region16: #{tpu_custom_call.1} parent=1 // pred_region
      %40 = dma.done [#allocation7], 1024
    $region17: #{tpu_custom_call.1} parent=1 // pred_fallthru
      _
    %v41 = vld [vmem:[#allocation2] sm:$0x3]
    %v42 = vld [vmem:[#allocation6] sm:$0xff]
    %v43 = vld [vmem:[#allocation6 + $0x8] sm:$0xff]
    %v44 = vld [vmem:[#allocation6 + $0x10] sm:$0xff]
    %v45 = vld [vmem:[#allocation6 + $0x18] sm:$0xff]
    %v46 = vld [vmem:[#allocation6 + $0x20] sm:$0xff]
    %v47 = vld [vmem:[#allocation6 + $0x28] sm:$0xff]
    %v48 = vld [vmem:[#allocation6 + $0x30] sm:$0xff]
    %v49 = vld [vmem:[#allocation6 + $0x38] sm:$0xff]
    %51 = vset.pattern.permute.xlu0 64
    %52 = vperm.xlu0 %51, %v42
    %v53 = vpop.permute.xlu0 %52
    %56 = vset.pattern.permute.xlu0 64
    %57 = vperm.xlu0 %56, %v43
    %v58 = vpop.permute.xlu0 %57
    %61 = vset.pattern.permute.xlu0 64
    %62 = vperm.xlu0 %61, %v44
    %v63 = vpop.permute.xlu0 %62
    %66 = vset.pattern.permute.xlu0 64
    %67 = vperm.xlu0 %66, %v45
    %v68 = vpop.permute.xlu0 %67
    %71 = vset.pattern.permute.xlu0 64
    %72 = vperm.xlu0 %71, %v46
    %v73 = vpop.permute.xlu0 %72
    %76 = vset.pattern.permute.xlu0 64
    %77 = vperm.xlu0 %76, %v47
    %v78 = vpop.permute.xlu0 %77
    %81 = vset.pattern.permute.xlu0 64
    %82 = vperm.xlu0 %81, %v48
    %v83 = vpop.permute.xlu0 %82
    %86 = vset.pattern.permute.xlu0 64
    %87 = vperm.xlu0 %86, %v49
    %v88 = vpop.permute.xlu0 %87
    %v90 = vlaneseq
    %v91 = vshrl.u32 %v90, 7
    %v92 = vsub.s32 0, %v91
    %v93 = vrot.slane %v41, %v92
    %v94 = vmul.f32 %v53, %v93
    %v95 = vmul.f32 %v58, %v93
    %v96 = vmul.f32 %v63, %v93
    %v97 = vmul.f32 %v68, %v93
    %v98 = vmul.f32 %v73, %v93
    %v99 = vmul.f32 %v78, %v93
    %v100 = vmul.f32 %v83, %v93
    %v101 = vmul.f32 %v88, %v93
    %102 = vset.pattern.permute.xlu0 65
    %103 = vperm.xlu0 %102, %v42
    %v104 = vpop.permute.xlu0 %103
    %106 = vset.pattern.permute.xlu0 65
    %107 = vperm.xlu0 %106, %v43
    %v108 = vpop.permute.xlu0 %107
    %110 = vset.pattern.permute.xlu0 65
    %111 = vperm.xlu0 %110, %v44
    %v112 = vpop.permute.xlu0 %111
    %114 = vset.pattern.permute.xlu0 65
    %115 = vperm.xlu0 %114, %v45
    %v116 = vpop.permute.xlu0 %115
    %118 = vset.pattern.permute.xlu0 65
    %119 = vperm.xlu0 %118, %v46
    %v120 = vpop.permute.xlu0 %119
    %122 = vset.pattern.permute.xlu0 65
    %123 = vperm.xlu0 %122, %v47
    %v124 = vpop.permute.xlu0 %123
    %126 = vset.pattern.permute.xlu0 65
    %127 = vperm.xlu0 %126, %v48
    %v128 = vpop.permute.xlu0 %127
    %130 = vset.pattern.permute.xlu0 65
    %131 = vperm.xlu0 %130, %v49
    %v132 = vpop.permute.xlu0 %131
    %v134 = vadd.f32 %v94, %v104
    %v135 = vadd.f32 %v95, %v108
    %v136 = vadd.f32 %v96, %v112
    %v137 = vadd.f32 %v97, %v116
    %v138 = vadd.f32 %v98, %v120
    %v139 = vadd.f32 %v99, %v124
    %v140 = vadd.f32 %v100, %v128
    %v141 = vadd.f32 %v101, %v132
    %v142 = vmax.f32 %v134, 0.0
    %v143 = vmax.f32 %v135, 0.0
    %v144 = vmax.f32 %v136, 0.0
    %v145 = vmax.f32 %v137, 0.0
    %v146 = vmax.f32 %v138, 0.0
    %v147 = vmax.f32 %v139, 0.0
    %v148 = vmax.f32 %v140, 0.0
    %v149 = vmax.f32 %v141, 0.0
    %150 = vset.pattern.permute.xlu0 66
    %151 = vperm.xlu0 %150, %v42
    %v152 = vpop.permute.xlu0 %151
    %154 = vset.pattern.permute.xlu0 66
    %155 = vperm.xlu0 %154, %v43
    %v156 = vpop.permute.xlu0 %155
    %158 = vset.pattern.permute.xlu0 66
    %159 = vperm.xlu0 %158, %v44
    %v160 = vpop.permute.xlu0 %159
    %162 = vset.pattern.permute.xlu0 66
    %163 = vperm.xlu0 %162, %v45
    %v164 = vpop.permute.xlu0 %163
    %166 = vset.pattern.permute.xlu0 66
    %167 = vperm.xlu0 %166, %v46
    %v168 = vpop.permute.xlu0 %167
    %170 = vset.pattern.permute.xlu0 66
    %171 = vperm.xlu0 %170, %v47
    %v172 = vpop.permute.xlu0 %171
    %174 = vset.pattern.permute.xlu0 66
    %175 = vperm.xlu0 %174, %v48
    %v176 = vpop.permute.xlu0 %175
    %178 = vset.pattern.permute.xlu0 66
    %179 = vperm.xlu0 %178, %v49
    %v180 = vpop.permute.xlu0 %179
    %vm182 = vcmask 523264
    %v183 = vsel %vm182, %v42, 0
    %v185 = vsel %vm182, %v43, 0
    %v187 = vsel %vm182, %v44, 0
    %v189 = vsel %vm182, %v45, 0
    %v191 = vsel %vm182, %v46, 0
    %v193 = vsel %vm182, %v47, 0
    %v195 = vsel %vm182, %v48, 0
    %v197 = vsel %vm182, %v49, 0
    %199 = vmatprep.subr.mxu0 0.0
    %200 = vmatpush1.msra.mxu0 %v142
    %201 = vmatprep.subr.mxu0 0.0
    %202 = vmatpush1.msra.mxu0 %v143
    %203 = vmatprep.subr.mxu0 0.0
    %204 = vmatpush1.msra.mxu0 %v144
    %205 = vmatprep.subr.mxu0 0.0
    %206 = vmatpush1.msra.mxu0 %v145
    %207 = vmatprep.subr.mxu0 0.0
    %208 = vmatpush1.msra.mxu0 %v146
    %209 = vmatprep.subr.mxu0 0.0
    %210 = vmatpush1.msra.mxu0 %v147
    %211 = vmatprep.subr.mxu0 0.0
    %212 = vmatpush1.msra.mxu0 %v148
    %213 = vmatprep.subr.mxu0 0.0
    %214 = vmatpush1.msra.mxu0 %v149
    %215 = vmatprep.subr.mxu0 0.0
    %216 = vmatpush1.msra.mxu0 0.0
    %217 = vmatprep.subr.mxu0 0.0
    %218 = vmatpush1.msra.mxu0 0.0
    %219 = vmatprep.subr.mxu0 0.0
    %220 = vmatpush1.msra.mxu0 0.0
    %221 = vmatprep.subr.mxu0 0.0
    %222 = vmatpush1.msra.mxu0 0.0
    %223 = vmatprep.subr.mxu0 0.0
    %224 = vmatpush1.msra.mxu0 0.0
    %225 = vmatprep.subr.mxu0 0.0
    %226 = vmatpush1.msra.mxu0 0.0
    %227 = vmatprep.subr.mxu0 0.0
    %228 = vmatpush1.msra.mxu0 0.0
    %229 = vmatprep.subr.mxu0 0.0
    %230 = vmatpush1.msra.mxu0 0.0
    %231 = vmatprep.subr.mxu0 0.0
    %232 = vmatpush1.msra.mxu0 0.0
    %233 = vmatprep.subr.mxu0 0.0
    %234 = vmatpush1.msra.mxu0 0.0
    %235 = vmatprep.subr.mxu0 0.0
    %236 = vmatpush1.msra.mxu0 0.0
    %237 = vmatprep.subr.mxu0 0.0
    %238 = vmatpush1.msra.mxu0 0.0
    %239 = vmatprep.subr.mxu0 0.0
    %240 = vmatpush1.msra.mxu0 0.0
    %241 = vmatprep.subr.mxu0 0.0
    %242 = vmatpush1.msra.mxu0 0.0
    %243 = vmatprep.subr.mxu0 0.0
    %244 = vmatpush1.msra.mxu0 0.0
    %245 = vmatprep.subr.mxu0 0.0
    %246 = vmatpush1.msra.mxu0 0.0
    %247 = vmatprep.subr.mxu0 0.0
    %248 = vmatpush1.msra.mxu0 0.0
    %249 = vmatprep.subr.mxu0 0.0
    %250 = vmatpush1.msra.mxu0 0.0
    %251 = vmatprep.subr.mxu0 0.0
    %252 = vmatpush1.msra.mxu0 0.0
    %253 = vmatprep.subr.mxu0 0.0
    %254 = vmatpush1.msra.mxu0 0.0
    %255 = vmatprep.subr.mxu0 0.0
    %256 = vmatpush1.msra.mxu0 0.0
    %257 = vmatprep.subr.mxu0 0.0
    %258 = vmatpush1.msra.mxu0 0.0
    %259 = vmatprep.subr.mxu0 0.0
    %260 = vmatpush1.msra.mxu0 0.0
    %261 = vmatprep.subr.mxu0 0.0
    %262 = vmatpush1.msra.mxu0 0.0
    %263 = vmatprep.mubr.f32.mxu0 0.0
    %264 = vmatmul.mubr.f32.gmra.mrb[0].mxu0 %v183
    %v265 = vpop.f32.mrb[0].mxu0
    %v266 = vadd.f32 %v152, %v265
    %v267 = vpop.f32.mrb[0].mxu0
    %268 = vmatprep.mubr.f32.mxu0 0.0
    %269 = vmatmul.mubr.f32.gmra.mrb[0].mxu0 %v185
    %v270 = vpop.f32.mrb[0].mxu0
    %v271 = vadd.f32 %v156, %v270
    %v272 = vpop.f32.mrb[0].mxu0
    %273 = vmatprep.mubr.f32.mxu0 0.0
    %274 = vmatmul.mubr.f32.gmra.mrb[0].mxu0 %v187
    %v275 = vpop.f32.mrb[0].mxu0
    %v276 = vadd.f32 %v160, %v275
    %v277 = vpop.f32.mrb[0].mxu0
    %278 = vmatprep.mubr.f32.mxu0 0.0
    %279 = vmatmul.mubr.f32.gmra.mrb[0].mxu0 %v189
    %v280 = vpop.f32.mrb[0].mxu0
    %v281 = vadd.f32 %v164, %v280
    %v282 = vpop.f32.mrb[0].mxu0
    %283 = vmatprep.mubr.f32.mxu0 0.0
    %284 = vmatmul.mubr.f32.gmra.mrb[0].mxu0 %v191
    %v285 = vpop.f32.mrb[0].mxu0
    %v286 = vadd.f32 %v168, %v285
    %v287 = vpop.f32.mrb[0].mxu0
    %288 = vmatprep.mubr.f32.mxu0 0.0
    %289 = vmatmul.mubr.f32.gmra.mrb[0].mxu0 %v193
    %v290 = vpop.f32.mrb[0].mxu0
    %v291 = vadd.f32 %v172, %v290
    %v292 = vpop.f32.mrb[0].mxu0
    %293 = vmatprep.mubr.f32.mxu0 0.0
    %294 = vmatmul.mubr.f32.gmra.mrb[0].mxu0 %v195
    %v295 = vpop.f32.mrb[0].mxu0
    %v296 = vadd.f32 %v176, %v295
    %v297 = vpop.f32.mrb[0].mxu0
    %298 = vmatprep.mubr.f32.mxu0 0.0
    %299 = vmatmul.mubr.f32.gmra.mrb[0].mxu0 %v197
    %v300 = vpop.f32.mrb[0].mxu0
    %v301 = vadd.f32 %v180, %v300
    %v302 = vpop.f32.mrb[0].mxu0
    %303 = vdwg.mxu0
    %v304 = vmax.f32 %v266, 0.0
    %v305 = vmax.f32 %v271, 0.0
    %v306 = vmax.f32 %v276, 0.0
    %v307 = vmax.f32 %v281, 0.0
    %v308 = vmax.f32 %v286, 0.0
    %v309 = vmax.f32 %v291, 0.0
    %v310 = vmax.f32 %v296, 0.0
    %v311 = vmax.f32 %v301, 0.0
    %312 = vset.pattern.permute.xlu0 67
    %313 = vperm.xlu0 %312, %v42
    %v314 = vpop.permute.xlu0 %313
    %316 = vset.pattern.permute.xlu0 67
    %317 = vperm.xlu0 %316, %v43
    %v318 = vpop.permute.xlu0 %317
    %320 = vset.pattern.permute.xlu0 67
    %321 = vperm.xlu0 %320, %v44
    %v322 = vpop.permute.xlu0 %321
    %324 = vset.pattern.permute.xlu0 67
    %325 = vperm.xlu0 %324, %v45
    %v326 = vpop.permute.xlu0 %325
    %328 = vset.pattern.permute.xlu0 67
    %329 = vperm.xlu0 %328, %v46
    %v330 = vpop.permute.xlu0 %329
    %332 = vset.pattern.permute.xlu0 67
    %333 = vperm.xlu0 %332, %v47
    %v334 = vpop.permute.xlu0 %333
    %336 = vset.pattern.permute.xlu0 67
    %337 = vperm.xlu0 %336, %v48
    %v338 = vpop.permute.xlu0 %337
    %340 = vset.pattern.permute.xlu0 67
    %341 = vperm.xlu0 %340, %v49
    %v342 = vpop.permute.xlu0 %341
    %v344 = vmul.f32 %v304, %v314
    %v345 = vmul.f32 %v305, %v318
    %v346 = vmul.f32 %v306, %v322
    %v347 = vmul.f32 %v307, %v326
    %v348 = vmul.f32 %v308, %v330
    %v349 = vmul.f32 %v309, %v334
    %v350 = vmul.f32 %v310, %v338
    %v351 = vmul.f32 %v311, %v342
    %v352 = vadd.f32 %v344, %v345
    %v353 = vadd.f32 %v352, %v346
    %v354 = vadd.f32 %v353, %v347
    %v355 = vadd.f32 %v354, %v348
    %v356 = vadd.f32 %v355, %v349
    %v357 = vadd.f32 %v356, %v350
    %v358 = vadd.f32 %v357, %v351
    %v359 = vrot.slane %v358, 4
    %v360 = vadd.f32 %v358, %v359
    %v361 = vrot.slane %v360, 2
    %v362 = vadd.f32 %v360, %v361
    %v363 = vrot.slane %v362, 1
    %v364 = vadd.f32 %v362, %v363
    %365 = vset.pattern.permute.xlu0 68
    %366 = vperm.xlu0 %365, %v42
    %v367 = vpop.permute.xlu0 %366
    %v369 = vadd.f32 %v364, %v367
    %370 = vst [vmem:[#allocation8] sm:$0x1] %v369
    %s371 = smul.u32 0, 128
    %v372 = vlaneseq
    %v373 = vand.u32 %v372, 127
    %v374 = vstv %s371
    %v375 = vadd.s32 %v374, %v373
    %vm376 = vcmp.lt.s32.totalorder %v375, 8
    %v378 = vrot.slane %v41, 1
    %v380 = vsub.f32 %v369, %v378
    %v381 = vsel %vm376, %v380, 0.0
    %v382 = vmul.f32 %v381, %v381
    %vm383 = vcmask 1040384
    %v384 = vsel %vm383, %v382, 0.0
    %385 = vadd.xlane.f32.xlu0 %v384
    %v386 = vpop.xlane.xlu0 %385
    %v387 = vrot.slane %v386, 4
    %v388 = vadd.f32 %v386, %v387
    %v389 = vrot.slane %v388, 2
    %v390 = vadd.f32 %v388, %v389
    %v391 = vrot.slane %v390, 1
    %v392 = vadd.f32 %v390, %v391
    %s393 = vtos %v392
    %s394 = scalar_lea.smem [#allocation9], 0
    %395 = sst [smem:[%s394]] %s393
    // Predicated region
    $region18: #{tpu_custom_call.1} parent=1 // pred_check
      _
    $region19: #{tpu_custom_call.1} parent=1 // pred_check_branch
      %397 = sbr.rel (0) target = $region21
    $region20: #{tpu_custom_call.1} parent=1 // pred_region
      %s399 = ssub.s32 16, 16
      %400 = vsyncadd [#allocation4], %s399
      %s402 = sshll.u32 [#allocation8], 4
      %s403 = int_to_ptr.vmem [resolvable:$true] %s402
      %405 = dma.vmem_to_hbm [thread:$0]  %s403, 16, %s2, [#allocation4]
    $region21: #{tpu_custom_call.1} parent=1 // pred_fallthru
      _
    // Predicated region
    $region22: #{tpu_custom_call.1} parent=1 // pred_check
      _
    $region23: #{tpu_custom_call.1} parent=1 // pred_check_branch
      %407 = sbr.rel (0) target = $region25
    $region24: #{tpu_custom_call.1} parent=1 // pred_region
      %s409 = ssub.s32 16, 16
      %410 = vsyncadd [#allocation5], %s409
      %413 = dma.smem_to_hbm [#allocation9], 16, %s3, [#allocation5]
    $region25: #{tpu_custom_call.1} parent=1 // pred_fallthru
      _
    // Predicated region
    $region26: #{tpu_custom_call.1} parent=1 // pred_check
      _
    $region27: #{tpu_custom_call.1} parent=1 // pred_check_branch
      %415 = sbr.rel (0) target = $region29
    $region28: #{tpu_custom_call.1} parent=1 // pred_region
      %416 = dma.done [#allocation4], 16
    $region29: #{tpu_custom_call.1} parent=1 // pred_fallthru
      _
    // Predicated region
    $region30: #{tpu_custom_call.1} parent=1 // pred_check
      _
    $region31: #{tpu_custom_call.1} parent=1 // pred_check_branch
      %418 = sbr.rel (0) target = $region33
    $region32: #{tpu_custom_call.1} parent=1 // pred_region
      %419 = dma.done [#allocation5], 16
    $region33: #{tpu_custom_call.1} parent=1 // pred_fallthru
      _
    %420 = sfence
    %421 = vsyncpa [#allocation3], 1
    %422 = vsyncpa [#allocation7], 1
    %423 = vsyncpa [#allocation4], 1
    %424 = vsyncpa [#allocation5], 1

</llo_original>
